<compile_context>
chip_gen: v6e
topology: v6e:2x2x1
jax: 0.10.0
libtpu: 0.0.40
codegen_flags: <defaults>
</compile_context>

<pallas_src>
import math

import jax
import jax.numpy as jnp
from jax.experimental import pallas as pl
from jax.experimental.pallas import tpu as pltpu


# --------------------------------------------------------------------------- #
# Fused kernel: GCN chain -> batch-dim softmax -> attend -> residual ->
#               LayerNorm -> Linear head.  w2 / fc weights prefetched via DMA.
# --------------------------------------------------------------------------- #
def _anaxnet_fused_kernel(feat_ref, adj_ref, w1_ref, w2_hbm_ref,
                          ln_w_ref, ln_b_ref, fc_wt_hbm_ref, fc_b_ref,
                          out_ref,
                          w2_vmem, fc_wt_vmem, dma_sems):
    # Kick off the weight prefetches immediately; they are not needed until the
    # GCN2 / fc matmuls, so the DMA overlaps with GCN1 compute.
    w2_cp = pltpu.make_async_copy(w2_hbm_ref, w2_vmem, dma_sems.at[0])
    fc_cp = pltpu.make_async_copy(fc_wt_hbm_ref, fc_wt_vmem, dma_sems.at[1])
    w2_cp.start()
    fc_cp.start()

    B, N, F = feat_ref.shape          # N here is the padded (multiple-of-8) node count
    H = w1_ref.shape[1]
    C = fc_wt_vmem.shape[1]

    feat_bf = feat_ref[...]                                    # (B, N, F)  bf16
    adj_b = jnp.broadcast_to(adj_ref[...], (B, N, N))          # tiny, bf16

    # ---- GraphConvolution 1: adj @ (feature @ W1); batch folded into M ----
    # N is a multiple of 8, so this reshape is a sublane-aligned view.
    s1 = jnp.dot(feat_bf.reshape(B * N, F), w1_ref[...],
                 preferred_element_type=jnp.float32)           # (B*N, H) f32 acc
    s1 = s1.reshape(B, N, H).astype(jnp.bfloat16)
    x1 = jax.lax.dot_general(adj_b, s1, (((2,), (1,)), ((0,), (0,))),
                             preferred_element_type=jnp.float32)   # (B, N, H)
    x1 = jnp.where(x1 > 0, x1, 0.2 * x1)                       # LeakyReLU(0.2), f32

    # ---- GraphConvolution 2: adj @ (x1 @ W2) ----
    w2_cp.wait()                                               # w2 DMA hidden behind GCN1
    s2 = jnp.dot(x1.astype(jnp.bfloat16).reshape(B * N, H), w2_vmem[...],
                 preferred_element_type=jnp.float32)           # (B*N, F)
    s2 = s2.reshape(B, N, F).astype(jnp.bfloat16)
    x2 = jax.lax.dot_general(adj_b, s2, (((2,), (1,)), ((0,), (0,))),
                             preferred_element_type=jnp.float32)   # (B, N, F)

    # ---- attention logits: feature @ x2^T (contract last dims; no transpose) ----
    logits = jax.lax.dot_general(feat_bf, x2.astype(jnp.bfloat16),
                                 (((2,), (2,)), ((0,), (0,))),
                                 preferred_element_type=jnp.float32)   # (B, N, N)

    # ---- softmax over dim 0 (torch legacy nn.Softmax() implicit dim for 3-D) ----
    m = jnp.max(logits, axis=0, keepdims=True)
    e = jnp.exp(logits - m)
    attn = e * pl.reciprocal(jnp.sum(e, axis=0, keepdims=True), approx=True)

    # ---- attend + residual (feature f32 cast delayed to here) ----
    y = jax.lax.dot_general(attn.astype(jnp.bfloat16), feat_bf,
                            (((2,), (1,)), ((0,), (0,))),
                            preferred_element_type=jnp.float32)    # (B, N, F)
    y = y + feat_bf.astype(jnp.float32)

    # ---- LayerNorm over last dim (eps=1e-5, elementwise affine), f32 ----
    mean = jnp.mean(y, axis=-1, keepdims=True)
    var = jnp.mean((y - mean) ** 2, axis=-1, keepdims=True)
    yn = (y - mean) * jax.lax.rsqrt(var + 1e-5)
    yn = yn * ln_w_ref[...] + ln_b_ref[...]                        # (1, F) broadcast

    # ---- Linear(F -> C): y @ W^T + b  (W pre-transposed to (F, C) in wrapper) ----
    fc_cp.wait()
    o = jnp.dot(yn.astype(jnp.bfloat16).reshape(B * N, F), fc_wt_vmem[...],
                preferred_element_type=jnp.float32)                # (B*N, C)
    out_ref[...] = o.reshape(B, N, C) + fc_b_ref[...]


def anaxnet_forward(feature, adj, w1, w2, ln_w, ln_b, fc_w, fc_b):
    """feature (B,N,F) f32, adj (N,N), w1 (F,H), w2 (H,F), fc_w (C,F), fc_b (1,C)."""
    B, N, F = feature.shape
    H = w1.shape[1]
    C = fc_w.shape[0]

    # Pad N to a multiple of 8 so in-kernel reshapes stay sublane-aligned views.
    # Zero-padded feature rows / adj rows+cols provably leave the valid rows intact.
    Np = -(-N // 8) * 8
    if Np != N:
        feature = jnp.pad(feature, ((0, 0), (0, Np - N), (0, 0)))
        adj = jnp.pad(adj, ((0, Np - N), (0, Np - N)))

    # bf16 MXU inputs cast / transposed once here (hoisted under jit);
    # f32 accumulation inside the kernel.
    feat_bf = feature.astype(jnp.bfloat16)
    adj_bf = adj.astype(jnp.bfloat16)
    w1_bf = w1.astype(jnp.bfloat16)
    w2_bf = w2.astype(jnp.bfloat16)
    fc_wt_bf = fc_w.T.astype(jnp.bfloat16)          # (F, C)

    # Advisory cost estimate for XLA's scheduler around the custom call.
    flops = 2 * B * Np * (F * H + Np * H            # GCN1
                          + H * F + Np * F          # GCN2
                          + Np * F                  # logits
                          + Np * F                  # attend
                          + F * C)                  # fc
    transcendentals = 2 * B * Np * Np + B * Np      # exp + recip + rsqrt (approx)
    bytes_accessed = (2 * (B * Np * F + Np * Np + F * H + H * F + F * C)   # bf16 inputs
                      + 4 * (2 * F + C)                                    # ln / fc bias
                      + 4 * B * Np * C)                                    # f32 output

    # Size the scoped VMEM limit to actual usage + margin (defaults: 16 MiB v5e,
    # 32 MiB v6e/v7x).  Capped at 64 MiB = v7x physical VMEM per core.
    weights_bytes = 2 * (F * H + H * F + F * C + Np * Np)
    acts_bytes = B * Np * (2 * F + 4 * (2 * H + 4 * F + 2 * Np + C))
    vmem_limit = min(max(2 * (weights_bytes + acts_bytes) + (8 << 20), 32 << 20),
                     64 << 20)

    vmem = pl.BlockSpec(memory_space=pltpu.MemorySpace.VMEM)
    hbm = pl.BlockSpec(memory_space=pl.ANY)

    out = pl.pallas_call(
        _anaxnet_fused_kernel,
        out_shape=jax.ShapeDtypeStruct((B, Np, C), jnp.float32),
        in_specs=[vmem,   # feature
                  vmem,   # adj
                  vmem,   # w1 (needed first -> auto-DMA'd up front)
                  hbm,    # w2 (manually prefetched, overlapped with GCN1)
                  vmem,   # ln_w
                  vmem,   # ln_b
                  hbm,    # fc_w^T (manually prefetched)
                  vmem],  # fc_b
        out_specs=vmem,
        scratch_shapes=[
            pltpu.VMEM((H, F), jnp.bfloat16),     # w2 landing buffer
            pltpu.VMEM((F, C), jnp.bfloat16),     # fc_w^T landing buffer
            pltpu.SemaphoreType.DMA((2,)),
        ],
        compiler_params=pltpu.CompilerParams(vmem_limit_bytes=int(vmem_limit)),
        cost_estimate=pl.CostEstimate(flops=int(flops),
                                      transcendentals=int(transcendentals),
                                      bytes_accessed=int(bytes_accessed)),
    )(feat_bf, adj_bf, w1_bf, w2_bf, ln_w, ln_b, fc_wt_bf, fc_b)

    return out[:, :N, :]


# --------------------------------------------------------------------------- #
# Pure-JAX reference.  Mirrors the PyTorch forward op-for-op and uses the same
# bf16-input / f32-accumulation precision as the kernel so the comparison is
# tight (the casts are the only deviation from f32 PyTorch numerics).
# --------------------------------------------------------------------------- #
def anaxnet_reference(feature, adj, w1, w2, ln_w, ln_b, fc_w, fc_b):
    bf16, f32 = jnp.bfloat16, jnp.float32
    fb = feature.astype(bf16)
    ab = adj.astype(bf16)
    s1 = jnp.einsum("bnf,fh->bnh", fb, w1.astype(bf16), preferred_element_type=f32)
    x1 = jnp.einsum("ij,bjh->bih", ab, s1.astype(bf16), preferred_element_type=f32)
    x1 = jnp.where(x1 > 0, x1, 0.2 * x1)
    s2 = jnp.einsum("bnh,hf->bnf", x1.astype(bf16), w2.astype(bf16),
                    preferred_element_type=f32)
    x2 = jnp.einsum("ij,bjf->bif", ab, s2.astype(bf16), preferred_element_type=f32)
    logits = jnp.einsum("bnf,bmf->bnm", fb, x2.astype(bf16), preferred_element_type=f32)
    s = jax.nn.softmax(logits, axis=0)          # torch nn.Softmax() implicit dim=0 for 3-D
    x = jnp.einsum("bnm,bmf->bnf", s.astype(bf16), fb, preferred_element_type=f32)
    y = x + fb.astype(f32)
    mean = jnp.mean(y, axis=-1, keepdims=True)
    var = jnp.mean((y - mean) ** 2, axis=-1, keepdims=True)
    yn = (y - mean) * jax.lax.rsqrt(var + 1e-5)
    yn = yn * ln_w + ln_b
    return jnp.einsum("bnf,cf->bnc", yn.astype(bf16), fc_w.astype(bf16),
                      preferred_element_type=f32) + fc_b


if __name__ == "__main__":
    # Small shapes consistent with the module:
    #   B=batch, N=anatomy_size, F=in_channel2(=anatomy_out), H=gc1 hidden, C=num_classes
    # N=6 deliberately exercises the pad-to-multiple-of-8 path (real model N=18 -> 24).
    B, N, F, H, C = 2, 6, 32, 64, 4

    key = jax.random.PRNGKey(0)
    ks = jax.random.split(key, 6)

    feature = jax.random.normal(ks[0], (B, N, F), jnp.float32)

    # anatomy adjacency (stand-in for the CSV-loaded matrix), values in [0, 1)
    adj = jax.random.uniform(ks[1], (N, N), jnp.float32)

    # GraphConvolution weights: uniform(-1/sqrt(out_features), 1/sqrt(out_features))
    w1 = jax.random.uniform(ks[2], (F, H), jnp.float32,
                            -1.0 / math.sqrt(H), 1.0 / math.sqrt(H))
    w2 = jax.random.uniform(ks[3], (H, F), jnp.float32,
                            -1.0 / math.sqrt(F), 1.0 / math.sqrt(F))

    # LayerNorm affine params (default init)
    ln_w = jnp.ones((1, F), jnp.float32)
    ln_b = jnp.zeros((1, F), jnp.float32)

    # Linear(F -> C) params
    bound = 1.0 / math.sqrt(F)
    fc_w = jax.random.uniform(ks[4], (C, F), jnp.float32, -bound, bound)
    fc_b = jax.random.uniform(ks[5], (1, C), jnp.float32, -bound, bound)

    out = anaxnet_forward(feature, adj, w1, w2, ln_w, ln_b, fc_w, fc_b)
    out = jax.block_until_ready(out)

    ref = anaxnet_reference(feature, adj, w1, w2, ln_w, ln_b, fc_w, fc_b)
    assert out.shape == (B, N, C)
    max_err = float(jnp.max(jnp.abs(out - ref)))
    assert jnp.allclose(out, ref, atol=3e-2, rtol=3e-2), max_err

    print("KERNEL_OK")
</pallas_src>

<mosaic_0001>
module attributes {stable_mosaic.version = 11 : i64} {
  func.func @_anaxnet_fused_kernel(%arg0: memref<2x8x32xbf16, #tpu.memory_space<vmem>>, %arg1: memref<8x8xbf16, #tpu.memory_space<vmem>>, %arg2: memref<32x64xbf16, #tpu.memory_space<vmem>>, %arg3: memref<64x32xbf16, #tpu.memory_space<any>>, %arg4: memref<1x32xf32, #tpu.memory_space<vmem>>, %arg5: memref<1x32xf32, #tpu.memory_space<vmem>>, %arg6: memref<32x4xbf16, #tpu.memory_space<any>>, %arg7: memref<1x4xf32, #tpu.memory_space<vmem>>, %arg8: memref<2x8x4xf32, #tpu.memory_space<vmem>>, %arg9: memref<64x32xbf16, #tpu.memory_space<vmem>>, %arg10: memref<32x4xbf16, #tpu.memory_space<vmem>>, %arg11: memref<2x!tpu.dma_semaphore, #tpu.memory_space<semaphore_mem>>) attributes {dimension_semantics = [], scalar_prefetch = 0 : i64, scratch_operands = 3 : i64, tpu.core_type = #tpu.core_type<tc>} {
    %c0_i32 = arith.constant 0 : i32
    %0 = tpu.memref_slice %arg11[%c0_i32] : memref<2x!tpu.dma_semaphore, #tpu.memory_space<semaphore_mem>> -> memref<1x!tpu.dma_semaphore, #tpu.memory_space<semaphore_mem>>
    %1 = tpu.memref_squeeze %0 : memref<1x!tpu.dma_semaphore, #tpu.memory_space<semaphore_mem>> -> memref<!tpu.dma_semaphore, #tpu.memory_space<semaphore_mem>>
    tpu.enqueue_dma source(%arg3 : memref<64x32xbf16, #tpu.memory_space<any>>) target(%arg9 : memref<64x32xbf16, #tpu.memory_space<vmem>>) target_semaphore(%1 : memref<!tpu.dma_semaphore, #tpu.memory_space<semaphore_mem>>)
    %c1_i32 = arith.constant 1 : i32
    %2 = tpu.memref_slice %arg11[%c1_i32] : memref<2x!tpu.dma_semaphore, #tpu.memory_space<semaphore_mem>> -> memref<1x!tpu.dma_semaphore, #tpu.memory_space<semaphore_mem>>
    %3 = tpu.memref_squeeze %2 : memref<1x!tpu.dma_semaphore, #tpu.memory_space<semaphore_mem>> -> memref<!tpu.dma_semaphore, #tpu.memory_space<semaphore_mem>>
    tpu.enqueue_dma source(%arg6 : memref<32x4xbf16, #tpu.memory_space<any>>) target(%arg10 : memref<32x4xbf16, #tpu.memory_space<vmem>>) target_semaphore(%3 : memref<!tpu.dma_semaphore, #tpu.memory_space<semaphore_mem>>)
    %c0 = arith.constant 0 : index
    %c0_0 = arith.constant 0 : index
    %c0_1 = arith.constant 0 : index
    %4 = vector.load %arg0[%c0, %c0_0, %c0_1] : memref<2x8x32xbf16, #tpu.memory_space<vmem>>, vector<2x8x32xbf16>
    %c0_2 = arith.constant 0 : index
    %c0_3 = arith.constant 0 : index
    %5 = vector.load %arg1[%c0_2, %c0_3] : memref<8x8xbf16, #tpu.memory_space<vmem>>, vector<8x8xbf16>
    %6 = vector.shape_cast %5 : vector<8x8xbf16> to vector<1x8x8xbf16>
    %7 = vector.broadcast %6 : vector<1x8x8xbf16> to vector<2x8x8xbf16>
    %8 = vector.shape_cast %4 : vector<2x8x32xbf16> to vector<16x32xbf16>
    %c0_4 = arith.constant 0 : index
    %c0_5 = arith.constant 0 : index
    %9 = vector.load %arg2[%c0_4, %c0_5] : memref<32x64xbf16, #tpu.memory_space<vmem>>, vector<32x64xbf16>
    %cst = arith.constant dense<0.000000e+00> : vector<16x64xf32>
    %10 = tpu.matmul %8, %9, %cst {dimension_numbers = #tpu.dot_dimension_numbers<[1], [0], [0], [1], [0, 0, 1, 1], [], []>} : vector<16x32xbf16>, vector<32x64xbf16>, vector<16x64xf32> -> vector<16x64xf32>
    %11 = vector.shape_cast %10 : vector<16x64xf32> to vector<2x8x64xf32>
    %12 = arith.truncf %11 : vector<2x8x64xf32> to vector<2x8x64xbf16>
    %cst_6 = arith.constant dense<0.000000e+00> : vector<2x8x64xf32>
    %13 = tpu.matmul %7, %12, %cst_6 {dimension_numbers = #tpu.dot_dimension_numbers<[2], [1], [1], [2], [0, 0, 0, 1, 1, 2], [0], [0]>} : vector<2x8x8xbf16>, vector<2x8x64xbf16>, vector<2x8x64xf32> -> vector<2x8x64xf32>
    %cst_7 = arith.constant 0.000000e+00 : f32
    %14 = vector.broadcast %cst_7 : f32 to vector<2x8x64xf32>
    %15 = arith.cmpf ogt, %13, %14 : vector<2x8x64xf32>
    %cst_8 = arith.constant 2.000000e-01 : f32
    %16 = vector.broadcast %cst_8 : f32 to vector<2x8x64xf32>
    %17 = arith.mulf %16, %13 : vector<2x8x64xf32>
    %18 = arith.select %15, %13, %17 : vector<2x8x64xi1>, vector<2x8x64xf32>
    %c0_i32_9 = arith.constant 0 : i32
    %19 = tpu.memref_slice %arg11[%c0_i32_9] : memref<2x!tpu.dma_semaphore, #tpu.memory_space<semaphore_mem>> -> memref<1x!tpu.dma_semaphore, #tpu.memory_space<semaphore_mem>>
    %20 = tpu.memref_squeeze %19 : memref<1x!tpu.dma_semaphore, #tpu.memory_space<semaphore_mem>> -> memref<!tpu.dma_semaphore, #tpu.memory_space<semaphore_mem>>
    tpu.wait_dma2 semaphore(%20 : memref<!tpu.dma_semaphore, #tpu.memory_space<semaphore_mem>>) src(%arg3 : memref<64x32xbf16, #tpu.memory_space<any>>) dst(%arg9 : memref<64x32xbf16, #tpu.memory_space<vmem>>)
    %21 = arith.truncf %18 : vector<2x8x64xf32> to vector<2x8x64xbf16>
    %22 = vector.shape_cast %21 : vector<2x8x64xbf16> to vector<16x64xbf16>
    %c0_10 = arith.constant 0 : index
    %c0_11 = arith.constant 0 : index
    %23 = vector.load %arg9[%c0_10, %c0_11] : memref<64x32xbf16, #tpu.memory_space<vmem>>, vector<64x32xbf16>
    %cst_12 = arith.constant dense<0.000000e+00> : vector<16x32xf32>
    %24 = tpu.matmul %22, %23, %cst_12 {dimension_numbers = #tpu.dot_dimension_numbers<[1], [0], [0], [1], [0, 0, 1, 1], [], []>} : vector<16x64xbf16>, vector<64x32xbf16>, vector<16x32xf32> -> vector<16x32xf32>
    %25 = vector.shape_cast %24 : vector<16x32xf32> to vector<2x8x32xf32>
    %26 = arith.truncf %25 : vector<2x8x32xf32> to vector<2x8x32xbf16>
    %cst_13 = arith.constant dense<0.000000e+00> : vector<2x8x32xf32>
    %27 = tpu.matmul %7, %26, %cst_13 {dimension_numbers = #tpu.dot_dimension_numbers<[2], [1], [1], [2], [0, 0, 0, 1, 1, 2], [0], [0]>} : vector<2x8x8xbf16>, vector<2x8x32xbf16>, vector<2x8x32xf32> -> vector<2x8x32xf32>
    %28 = arith.truncf %27 : vector<2x8x32xf32> to vector<2x8x32xbf16>
    %cst_14 = arith.constant dense<0.000000e+00> : vector<2x8x8xf32>
    %29 = tpu.matmul %4, %28, %cst_14 {dimension_numbers = #tpu.dot_dimension_numbers<[2], [2], [1], [1], [0, 0, 0, 1, 1, 1], [0], [0]>} : vector<2x8x32xbf16>, vector<2x8x32xbf16>, vector<2x8x8xf32> -> vector<2x8x8xf32>
    %cst_15 = arith.constant dense<0xFF800000> : vector<8x8xf32>
    %30 = vector.multi_reduction <maximumf>, %29, %cst_15 [0] : vector<2x8x8xf32> to vector<8x8xf32>
    %31 = vector.shape_cast %30 : vector<8x8xf32> to vector<1x8x8xf32>
    %32 = vector.broadcast %31 : vector<1x8x8xf32> to vector<2x8x8xf32>
    %33 = arith.subf %29, %32 : vector<2x8x8xf32>
    %34 = math.exp %33 : vector<2x8x8xf32>
    %cst_16 = arith.constant dense<0.000000e+00> : vector<8x8xf32>
    %35 = vector.multi_reduction <add>, %34, %cst_16 [0] : vector<2x8x8xf32> to vector<8x8xf32>
    %36 = vector.shape_cast %35 : vector<8x8xf32> to vector<1x8x8xf32>
    %37 = tpu.reciprocal %36 {approx = true} : vector<1x8x8xf32> -> vector<1x8x8xf32>
    %38 = vector.broadcast %37 : vector<1x8x8xf32> to vector<2x8x8xf32>
    %39 = arith.mulf %34, %38 : vector<2x8x8xf32>
    %40 = arith.truncf %39 : vector<2x8x8xf32> to vector<2x8x8xbf16>
    %cst_17 = arith.constant dense<0.000000e+00> : vector<2x8x32xf32>
    %41 = tpu.matmul %40, %4, %cst_17 {dimension_numbers = #tpu.dot_dimension_numbers<[2], [1], [1], [2], [0, 0, 0, 1, 1, 2], [0], [0]>} : vector<2x8x8xbf16>, vector<2x8x32xbf16>, vector<2x8x32xf32> -> vector<2x8x32xf32>
    %42 = arith.extf %4 : vector<2x8x32xbf16> to vector<2x8x32xf32>
    %43 = arith.addf %41, %42 : vector<2x8x32xf32>
    %cst_18 = arith.constant dense<0.000000e+00> : vector<2x8xf32>
    %44 = vector.multi_reduction <add>, %43, %cst_18 [2] : vector<2x8x32xf32> to vector<2x8xf32>
    %45 = vector.shape_cast %44 : vector<2x8xf32> to vector<2x8x1xf32>
    %cst_19 = arith.constant 3.200000e+01 : f32
    %46 = vector.broadcast %cst_19 : f32 to vector<2x8x1xf32>
    %47 = arith.divf %45, %46 : vector<2x8x1xf32>
    %48 = vector.broadcast %47 : vector<2x8x1xf32> to vector<2x8x32xf32>
    %49 = arith.subf %43, %48 : vector<2x8x32xf32>
    %50 = arith.mulf %49, %49 : vector<2x8x32xf32>
    %cst_20 = arith.constant dense<0.000000e+00> : vector<2x8xf32>
    %51 = vector.multi_reduction <add>, %50, %cst_20 [2] : vector<2x8x32xf32> to vector<2x8xf32>
    %52 = vector.shape_cast %51 : vector<2x8xf32> to vector<2x8x1xf32>
    %cst_21 = arith.constant 3.200000e+01 : f32
    %53 = vector.broadcast %cst_21 : f32 to vector<2x8x1xf32>
    %54 = arith.divf %52, %53 : vector<2x8x1xf32>
    %55 = vector.broadcast %47 : vector<2x8x1xf32> to vector<2x8x32xf32>
    %56 = arith.subf %43, %55 : vector<2x8x32xf32>
    %cst_22 = arith.constant 9.99999974E-6 : f32
    %57 = vector.broadcast %cst_22 : f32 to vector<2x8x1xf32>
    %58 = arith.addf %54, %57 : vector<2x8x1xf32>
    %59 = math.rsqrt %58 : vector<2x8x1xf32>
    %60 = vector.broadcast %59 : vector<2x8x1xf32> to vector<2x8x32xf32>
    %61 = arith.mulf %56, %60 : vector<2x8x32xf32>
    %c0_23 = arith.constant 0 : index
    %c0_24 = arith.constant 0 : index
    %62 = vector.load %arg4[%c0_23, %c0_24] : memref<1x32xf32, #tpu.memory_space<vmem>>, vector<1x32xf32>
    %63 = vector.shape_cast %62 : vector<1x32xf32> to vector<1x1x32xf32>
    %64 = vector.broadcast %63 : vector<1x1x32xf32> to vector<2x8x32xf32>
    %65 = arith.mulf %61, %64 : vector<2x8x32xf32>
    %c0_25 = arith.constant 0 : index
    %c0_26 = arith.constant 0 : index
    %66 = vector.load %arg5[%c0_25, %c0_26] : memref<1x32xf32, #tpu.memory_space<vmem>>, vector<1x32xf32>
    %67 = vector.shape_cast %66 : vector<1x32xf32> to vector<1x1x32xf32>
    %68 = vector.broadcast %67 : vector<1x1x32xf32> to vector<2x8x32xf32>
    %69 = arith.addf %65, %68 : vector<2x8x32xf32>
    %c1_i32_27 = arith.constant 1 : i32
    %70 = tpu.memref_slice %arg11[%c1_i32_27] : memref<2x!tpu.dma_semaphore, #tpu.memory_space<semaphore_mem>> -> memref<1x!tpu.dma_semaphore, #tpu.memory_space<semaphore_mem>>
    %71 = tpu.memref_squeeze %70 : memref<1x!tpu.dma_semaphore, #tpu.memory_space<semaphore_mem>> -> memref<!tpu.dma_semaphore, #tpu.memory_space<semaphore_mem>>
    tpu.wait_dma2 semaphore(%71 : memref<!tpu.dma_semaphore, #tpu.memory_space<semaphore_mem>>) src(%arg6 : memref<32x4xbf16, #tpu.memory_space<any>>) dst(%arg10 : memref<32x4xbf16, #tpu.memory_space<vmem>>)
    %72 = arith.truncf %69 : vector<2x8x32xf32> to vector<2x8x32xbf16>
    %73 = vector.shape_cast %72 : vector<2x8x32xbf16> to vector<16x32xbf16>
    %c0_28 = arith.constant 0 : index
    %c0_29 = arith.constant 0 : index
    %74 = vector.load %arg10[%c0_28, %c0_29] : memref<32x4xbf16, #tpu.memory_space<vmem>>, vector<32x4xbf16>
    %cst_30 = arith.constant dense<0.000000e+00> : vector<16x4xf32>
    %75 = tpu.matmul %73, %74, %cst_30 {dimension_numbers = #tpu.dot_dimension_numbers<[1], [0], [0], [1], [0, 0, 1, 1], [], []>} : vector<16x32xbf16>, vector<32x4xbf16>, vector<16x4xf32> -> vector<16x4xf32>
    %76 = vector.shape_cast %75 : vector<16x4xf32> to vector<2x8x4xf32>
    %c0_31 = arith.constant 0 : index
    %c0_32 = arith.constant 0 : index
    %77 = vector.load %arg7[%c0_31, %c0_32] : memref<1x4xf32, #tpu.memory_space<vmem>>, vector<1x4xf32>
    %78 = vector.shape_cast %77 : vector<1x4xf32> to vector<1x1x4xf32>
    %79 = vector.broadcast %78 : vector<1x1x4xf32> to vector<2x8x4xf32>
    %80 = arith.addf %76, %79 : vector<2x8x4xf32>
    %c0_33 = arith.constant 0 : index
    %c0_34 = arith.constant 0 : index
    %c0_35 = arith.constant 0 : index
    %81 = vector.load %arg8[%c0_33, %c0_34, %c0_35] : memref<2x8x4xf32, #tpu.memory_space<vmem>>, vector<2x8x4xf32>
    tpu.vector_store %arg8[%c0_33, %c0_34, %c0_35], %80 {strides = array<i32>} : memref<2x8x4xf32, #tpu.memory_space<vmem>>, vector<2x8x4xf32>,
    return
  }
}

</mosaic_0001>

<llo_original>
// kernel: tpu_custom_call.1
$region0: #{tpu_custom_call.1}
  #allocation0 [shape = 'u32[]', space=smem, size = 0x4, offset = 0x4, fixed_abs, tag = 'smem constant byte address 0x4 - core index']
  #allocation1 [shape = 'u32[144,128]{1,0:T(1,128)}', space=vmem, size = 0x12000, scoped, tag = 'internal scratch']
  #allocation2 [shape = 'bf16[64,32]{1,0:T(8,128)(2,1)}', space=vmem, size = 0x4000, scoped, tag = 'scratch operand']
  #allocation3 [shape = 'bf16[32,4]{1,0:T(8,128)(2,1)}', space=vmem, size = 0x2000, scoped, tag = 'scratch operand']
  #allocation4 [shape = 's32[2]{0}', space=sflag, size = 0x8, scoped, tag = 'scratch operand']
  #allocation5 [shape = 's32[]', space=sflag, size = 0x4, offset = 0, fixed_abs, tag = 'sflag constant byte address 0x0 - dummy sync flag']
  #allocation6 [shape = 's32[]', space=sflag, size = 0x4, offset = 0, fixed_abs, tag = 'sflag constant byte address 0x0 - dummy sync flag']
  %s0 = inlined_call_operand.vmem [shape: bf16[2,8,32], index: 0, kind: input, shape index: {}]
  %s1 = inlined_call_operand.vmem [shape: bf16[8,8], index: 1, kind: input, shape index: {}]
  %s2 = inlined_call_operand.vmem [shape: bf16[32,64], index: 2, kind: input, shape index: {}]
  %s3 = inlined_call_operand.vmem [shape: bf16[64,32], index: 3, kind: input, shape index: {}]
  %s4 = inlined_call_operand.vmem [shape: f32[1,32], index: 4, kind: input, shape index: {}]
  %s5 = inlined_call_operand.vmem [shape: f32[1,32], index: 5, kind: input, shape index: {}]
  %s6 = inlined_call_operand.vmem [shape: bf16[32,4], index: 6, kind: input, shape index: {}]
  %s7 = inlined_call_operand.vmem [shape: f32[1,4], index: 7, kind: input, shape index: {}]
  %s8 = inlined_call_operand.vmem [shape: f32[2,8,4], index: 8, kind: output, shape index: {}]
  %s9 = sld [smem:[#allocation0]]
  $region102: #{tpu_custom_call.1} parent=0
    _
  %s11 = ssub.s32 1, %s9
  %s12 = scalar_select 0, %s11, %s9
  // Predicated region
  $region2: #{tpu_custom_call.1} parent=0 // pred_check
    _
  $region3: #{tpu_custom_call.1} parent=0 // pred_check_branch
    %14 = sbr.rel (0) target = $region5
  $region4: #{tpu_custom_call.1} parent=0 // pred_region
    _
  $region5: #{tpu_custom_call.1} parent=0 // pred_fallthru
    _
  // Predicated region
  $region6: #{tpu_custom_call.1} parent=0 // pred_check
    _
  $region7: #{tpu_custom_call.1} parent=0 // pred_check_branch
    %16 = sbr.rel (0) target = $region9
  $region8: #{tpu_custom_call.1} parent=0 // pred_region
    _
  $region9: #{tpu_custom_call.1} parent=0 // pred_fallthru
    _
  // Predicated region
  $region10: #{tpu_custom_call.1} parent=0 // pred_check
    _
  $region11: #{tpu_custom_call.1} parent=0 // pred_check_branch
    %18 = sbr.rel (0) target = $region13
  $region12: #{tpu_custom_call.1} parent=0 // pred_region
    _
  $region13: #{tpu_custom_call.1} parent=0 // pred_fallthru
    _
  // Predicated region
  $region14: #{tpu_custom_call.1} parent=0 // pred_check
    _
  $region15: #{tpu_custom_call.1} parent=0 // pred_check_branch
    %20 = sbr.rel (0) target = $region17
  $region16: #{tpu_custom_call.1} parent=0 // pred_region
    _
  $region17: #{tpu_custom_call.1} parent=0 // pred_fallthru
    _
  // Predicated region
  $region18: #{tpu_custom_call.1} parent=0 // pred_check
    _
  $region19: #{tpu_custom_call.1} parent=0 // pred_check_branch
    %22 = sbr.rel (0) target = $region21
  $region20: #{tpu_custom_call.1} parent=0 // pred_region
    _
  $region21: #{tpu_custom_call.1} parent=0 // pred_fallthru
    _
  // Predicated region
  $region22: #{tpu_custom_call.1} parent=0 // pred_check
    _
  $region23: #{tpu_custom_call.1} parent=0 // pred_check_branch
    %24 = sbr.rel (0) target = $region25
  $region24: #{tpu_custom_call.1} parent=0 // pred_region
    _
  $region25: #{tpu_custom_call.1} parent=0 // pred_fallthru
    _
  %p27 = scmp.lt.u32.totalorder 32, 8
  %p28 = pneg %p27
  // Predicated region
  $region26: #{tpu_custom_call.1} parent=0 // pred_check
    _
  $region27: #{tpu_custom_call.1} parent=0 // pred_check_branch
    %30 = sbr.rel (%p27) target = $region29
  $region28: #{tpu_custom_call.1} parent=0 // pred_region
    %s46 = sand.u32 32, 7
    %p47 = scmp.eq.s32.totalorder %s46, 0
    // Predicated region
    $region41: #{tpu_custom_call.1} parent=28 // pred_check
      %p48 = pneg %p47
    $region42: #{tpu_custom_call.1} parent=28 // pred_check_branch
      %50 = sbr.rel (%p48) target = $region44
    $region43: #{tpu_custom_call.1} parent=28 // pred_region
      loop: start=0, step=1, limit=1
      $region45: #{tpu_custom_call.1} parent=43 // loop_pre_header
        _
      $region46: #{tpu_custom_call.1} parent=43 // loop_header
        %s52 = sphi 0, %s56
        %p53 = scmp.ge.s32.totalorder %s52, 1
        %s57 = sphi %s3, %s3
        %s58 = sphi [#allocation2], [#allocation2]
      $region47: #{tpu_custom_call.1} parent=43 // loop_header_branch
        %55 = sbr.rel (%p53) target = $region51
      $region48: #{tpu_custom_call.1} parent=43 // loop_body
        %v59 = vld [vmem:[%s57] sm:$0xff]
        %60 = vst [vmem:[%s58] sm:$0xff] %v59
        %v61 = vld [vmem:[%s57 + $0x8] sm:$0xff]
        %62 = vst [vmem:[%s58 + $0x8] sm:$0xff] %v61
        %v63 = vld [vmem:[%s57 + $0x10] sm:$0xff]
        %64 = vst [vmem:[%s58 + $0x10] sm:$0xff] %v63
        %v65 = vld [vmem:[%s57 + $0x18] sm:$0xff]
        %66 = vst [vmem:[%s58 + $0x18] sm:$0xff] %v65
      $region49: #{tpu_custom_call.1} parent=43 // loop_footer
        %s56 = sadd.s32 1, %s52
      $region50: #{tpu_custom_call.1} parent=43 // loop_footer_branch
        %51 = sbr.rel target = $region46
      $region51: #{tpu_custom_call.1} parent=43 // loop_exit
        _
    $region44: #{tpu_custom_call.1} parent=28 // pred_fallthru
      _
    %p67 = pneg %p47
    // Predicated region
    $region52: #{tpu_custom_call.1} parent=28 // pred_check
      _
    $region53: #{tpu_custom_call.1} parent=28 // pred_check_branch
      %69 = sbr.rel (%p47) target = $region55
    $region54: #{tpu_custom_call.1} parent=28 // pred_region
      %s70 = sand.u32 32, 7
    $region55: #{tpu_custom_call.1} parent=28 // pred_fallthru
      _
  $region29: #{tpu_custom_call.1} parent=0 // pred_fallthru
    _
  // Predicated region
  $region30: #{tpu_custom_call.1} parent=0 // pred_check
    %p31 = pneg %p27
  $region31: #{tpu_custom_call.1} parent=0 // pred_check_branch
    %33 = sbr.rel (%p31) target = $region33
  $region32: #{tpu_custom_call.1} parent=0 // pred_region
    %s34 = sshll.u32 1, 32
    %s35 = ssub.s32 %s34, 1
    loop: start=0, step=1, limit=1
    $region34: #{tpu_custom_call.1} parent=32 // loop_pre_header
      _
    $region35: #{tpu_custom_call.1} parent=32 // loop_header
      %s37 = sphi 0, %s41
      %p38 = scmp.ge.s32.totalorder %s37, 1
      %s42 = sphi %s3, %s3
      %s43 = sphi [#allocation2], [#allocation2]
    $region36: #{tpu_custom_call.1} parent=32 // loop_header_branch
      %40 = sbr.rel (%p38) target = $region40
    $region37: #{tpu_custom_call.1} parent=32 // loop_body
      %v44 = vld [vmem:[%s42] sm:%s35]
      %45 = vst [vmem:[%s43] sm:%s35] %v44
    $region38: #{tpu_custom_call.1} parent=32 // loop_footer
      %s41 = sadd.s32 1, %s37
    $region39: #{tpu_custom_call.1} parent=32 // loop_footer_branch
      %36 = sbr.rel target = $region35
    $region40: #{tpu_custom_call.1} parent=32 // loop_exit
      _
  $region33: #{tpu_custom_call.1} parent=0 // pred_fallthru
    _
  // Predicated region
  $region56: #{tpu_custom_call.1} parent=0 // pred_check
    _
  $region57: #{tpu_custom_call.1} parent=0 // pred_check_branch
    %73 = sbr.rel (0) target = $region59
  $region58: #{tpu_custom_call.1} parent=0 // pred_region
    %74 = vsyncadd [#allocation4], 512
  $region59: #{tpu_custom_call.1} parent=0 // pred_fallthru
    _
  %s75 = scalar_lea.sflag [#allocation4], 1
  %p77 = scmp.lt.u32.totalorder 16, 8
  %p78 = pneg %p77
  // Predicated region
  $region60: #{tpu_custom_call.1} parent=0 // pred_check
    _
  $region61: #{tpu_custom_call.1} parent=0 // pred_check_branch
    %80 = sbr.rel (%p77) target = $region63
  $region62: #{tpu_custom_call.1} parent=0 // pred_region
    %s96 = sand.u32 16, 7
    %p97 = scmp.eq.s32.totalorder %s96, 0
    // Predicated region
    $region75: #{tpu_custom_call.1} parent=62 // pred_check
      %p98 = pneg %p97
    $region76: #{tpu_custom_call.1} parent=62 // pred_check_branch
      %100 = sbr.rel (%p98) target = $region78
    $region77: #{tpu_custom_call.1} parent=62 // pred_region
      loop: start=0, step=1, limit=1
      $region79: #{tpu_custom_call.1} parent=77 // loop_pre_header
        _
      $region80: #{tpu_custom_call.1} parent=77 // loop_header
        %s102 = sphi 0, %s106
        %p103 = scmp.ge.s32.totalorder %s102, 1
        %s107 = sphi %s6, %s6
        %s108 = sphi [#allocation3], [#allocation3]
      $region81: #{tpu_custom_call.1} parent=77 // loop_header_branch
        %105 = sbr.rel (%p103) target = $region85
      $region82: #{tpu_custom_call.1} parent=77 // loop_body
        %v109 = vld [vmem:[%s107] sm:$0xff]
        %110 = vst [vmem:[%s108] sm:$0xff] %v109
        %v111 = vld [vmem:[%s107 + $0x8] sm:$0xff]
        %112 = vst [vmem:[%s108 + $0x8] sm:$0xff] %v111
      $region83: #{tpu_custom_call.1} parent=77 // loop_footer
        %s106 = sadd.s32 1, %s102
      $region84: #{tpu_custom_call.1} parent=77 // loop_footer_branch
        %101 = sbr.rel target = $region80
      $region85: #{tpu_custom_call.1} parent=77 // loop_exit
        _
    $region78: #{tpu_custom_call.1} parent=62 // pred_fallthru
      _
    %p113 = pneg %p97
    // Predicated region
    $region86: #{tpu_custom_call.1} parent=62 // pred_check
      _
    $region87: #{tpu_custom_call.1} parent=62 // pred_check_branch
      %115 = sbr.rel (%p97) target = $region89
    $region88: #{tpu_custom_call.1} parent=62 // pred_region
      %s116 = sand.u32 16, 7
    $region89: #{tpu_custom_call.1} parent=62 // pred_fallthru
      _
  $region63: #{tpu_custom_call.1} parent=0 // pred_fallthru
    _
  // Predicated region
  $region64: #{tpu_custom_call.1} parent=0 // pred_check
    %p81 = pneg %p77
  $region65: #{tpu_custom_call.1} parent=0 // pred_check_branch
    %83 = sbr.rel (%p81) target = $region67
  $region66: #{tpu_custom_call.1} parent=0 // pred_region
    %s84 = sshll.u32 1, 16
    %s85 = ssub.s32 %s84, 1
    loop: start=0, step=1, limit=1
    $region68: #{tpu_custom_call.1} parent=66 // loop_pre_header
      _
    $region69: #{tpu_custom_call.1} parent=66 // loop_header
      %s87 = sphi 0, %s91
      %p88 = scmp.ge.s32.totalorder %s87, 1
      %s92 = sphi %s6, %s6
      %s93 = sphi [#allocation3], [#allocation3]
    $region70: #{tpu_custom_call.1} parent=66 // loop_header_branch
      %90 = sbr.rel (%p88) target = $region74
    $region71: #{tpu_custom_call.1} parent=66 // loop_body
      %v94 = vld [vmem:[%s92] sm:%s85]
      %95 = vst [vmem:[%s93] sm:%s85] %v94
    $region72: #{tpu_custom_call.1} parent=66 // loop_footer
      %s91 = sadd.s32 1, %s87
    $region73: #{tpu_custom_call.1} parent=66 // loop_footer_branch
      %86 = sbr.rel target = $region69
    $region74: #{tpu_custom_call.1} parent=66 // loop_exit
      _
  $region67: #{tpu_custom_call.1} parent=0 // pred_fallthru
    _
  // Predicated region
  $region90: #{tpu_custom_call.1} parent=0 // pred_check
    _
  $region91: #{tpu_custom_call.1} parent=0 // pred_check_branch
    %119 = sbr.rel (0) target = $region93
  $region92: #{tpu_custom_call.1} parent=0 // pred_region
    %120 = vsyncadd %s75, 256
  $region93: #{tpu_custom_call.1} parent=0 // pred_fallthru
    _
  %v121 = vld [vmem:[%s0] sm:$0xf]
  %v122 = vld [vmem:[%s0 + $0x4] sm:$0xf]
  %v123 = vld [vmem:[%s1] sm:$0xf]
  %v124 = vld [vmem:[%s2] sm:$0xf]
  %v125 = vld [vmem:[%s2 + $0x4] sm:$0xf]
  %v126 = vld [vmem:[%s2 + $0x8] sm:$0xf]
  %v127 = vld [vmem:[%s2 + $0xc] sm:$0xf]
  %v130 = vunpack.c.l.b16 %v121
  %v131 = vunpack.c.l.b16 %v122
  %v132 = vpack.c.b16 %v131, %v130
  %v137 = vunpack.c.l.b16 %v124
  %v138 = vunpack.c.l.b16 %v125
  %v139 = vunpack.c.l.b16 %v126
  %v140 = vunpack.c.l.b16 %v127
  %v141 = vpack.c.b16 %v138, %v137
  %v142 = vpack.c.b16 %v140, %v139
  %vm145 = vcmask 261120
  %v147 = vsel %vm145, %v132, 0
  %149 = vmatprep.subr.bf16.mxu0 0
  %150 = vmatpush1.bf16.msra.mxu0 0
  %151 = vmatprep.subr.bf16.mxu0 0
  %152 = vmatpush1.bf16.msra.mxu0 0
  %153 = vmatprep.subr.bf16.mxu0 0
  %154 = vmatpush1.bf16.msra.mxu0 0
  %155 = vmatprep.subr.bf16.mxu0 0
  %156 = vmatpush1.bf16.msra.mxu0 0
  %157 = vmatprep.subr.bf16.mxu0 0
  %158 = vmatpush1.bf16.msra.mxu0 0
  %159 = vmatprep.subr.bf16.mxu0 0
  %160 = vmatpush1.bf16.msra.mxu0 0
  %161 = vmatprep.subr.bf16.mxu0 0
  %162 = vmatpush1.bf16.msra.mxu0 %v142
  %163 = vmatprep.subr.bf16.mxu0 0
  %164 = vmatpush1.bf16.msra.mxu0 %v141
  %165 = vmatprep.subr.bf16.mxu0 0
  %166 = vmatpush2.bf16.msra.mxu0 0
  %167 = vmatprep.subr.bf16.mxu0 0
  %168 = vmatpush2.bf16.msra.mxu0 0
  %169 = vmatprep.subr.bf16.mxu0 0
  %170 = vmatpush2.bf16.msra.mxu0 0
  %171 = vmatprep.subr.bf16.mxu0 0
  %172 = vmatpush2.bf16.msra.mxu0 0
  %173 = vmatprep.subr.bf16.mxu0 0
  %174 = vmatpush2.bf16.msra.mxu0 0
  %175 = vmatprep.subr.bf16.mxu0 0
  %176 = vmatpush2.bf16.msra.mxu0 0
  %177 = vmatprep.subr.bf16.mxu0 0
  %178 = vmatpush2.bf16.msra.mxu0 0
  %179 = vmatprep.subr.bf16.mxu0 0
  %180 = vmatpush2.bf16.msra.mxu0 0
  %181 = vmatprep.mubr.bf16.mxu0 0
  %182 = vmatmul.mubr.bf16.gmra.mxu0 %v147
  %v183 = vpop.f32.mrf.mxu0
  %v184 = vadd.f32 0.0, %v183
  %v185 = vpop.f32.mrf.mxu0
  %v186 = vpop.f32.mrf.mxu0
  %v187 = vadd.f32 0.0, %v186
  %v188 = vpop.f32.mrf.mxu0
  %189 = vdwg.mxu0
  %v190 = vpack.c.bf16 %v184, %v184
  %v191 = vpack.c.bf16 %v187, %v187
  %vm192 = vcmask 64512
  %v194 = vsel %vm192, %v123, 0
  %vm196 = vcmask 1043456
  %v198 = vsel %vm196, %v190, 0
  %200 = vmatprep.subr.bf16.mxu0 0
  %201 = vmatpush1.bf16.msra.mxu0 0
  %202 = vmatprep.subr.bf16.mxu0 0
  %203 = vmatpush1.bf16.msra.mxu0 0
  %204 = vmatprep.subr.bf16.mxu0 0
  %205 = vmatpush1.bf16.msra.mxu0 0
  %206 = vmatprep.subr.bf16.mxu0 0
  %207 = vmatpush1.bf16.msra.mxu0 0
  %208 = vmatprep.subr.bf16.mxu0 0
  %209 = vmatpush1.bf16.msra.mxu0 0
  %210 = vmatprep.subr.bf16.mxu0 0
  %211 = vmatpush1.bf16.msra.mxu0 0
  %212 = vmatprep.subr.bf16.mxu0 0
  %213 = vmatpush1.bf16.msra.mxu0 0
  %214 = vmatprep.subr.bf16.mxu0 0
  %215 = vmatpush1.bf16.msra.mxu0 %v198
  %216 = vmatprep.subr.bf16.mxu0 0
  %217 = vmatpush2.bf16.msra.mxu0 0
  %218 = vmatprep.subr.bf16.mxu0 0
  %219 = vmatpush2.bf16.msra.mxu0 0
  %220 = vmatprep.subr.bf16.mxu0 0
  %221 = vmatpush2.bf16.msra.mxu0 0
  %222 = vmatprep.subr.bf16.mxu0 0
  %223 = vmatpush2.bf16.msra.mxu0 0
  %224 = vmatprep.subr.bf16.mxu0 0
  %225 = vmatpush2.bf16.msra.mxu0 0
  %226 = vmatprep.subr.bf16.mxu0 0
  %227 = vmatpush2.bf16.msra.mxu0 0
  %228 = vmatprep.subr.bf16.mxu0 0
  %229 = vmatpush2.bf16.msra.mxu0 0
  %230 = vmatprep.subr.bf16.mxu0 0
  %231 = vmatpush2.bf16.msra.mxu0 0
  %232 = vmatprep.mubr.bf16.mxu0 0
  %233 = vmatmul.mubr.bf16.gmra.mxu0 %v194
  %v234 = vpop.f32.mrf.mxu0
  %v235 = vadd.f32 0.0, %v234
  %v236 = vpop.f32.mrf.mxu0
  %v237 = vpop.f32.mrf.mxu0
  %v238 = vpop.f32.mrf.mxu0
  %239 = vdwg.mxu0
  %v241 = vsel %vm196, %v191, 0
  %243 = vmatprep.subr.bf16.mxu0 0
  %244 = vmatpush1.bf16.msra.mxu0 0
  %245 = vmatprep.subr.bf16.mxu0 0
  %246 = vmatpush1.bf16.msra.mxu0 0
  %247 = vmatprep.subr.bf16.mxu0 0
  %248 = vmatpush1.bf16.msra.mxu0 0
  %249 = vmatprep.subr.bf16.mxu0 0
  %250 = vmatpush1.bf16.msra.mxu0 0
  %251 = vmatprep.subr.bf16.mxu0 0
  %252 = vmatpush1.bf16.msra.mxu0 0
  %253 = vmatprep.subr.bf16.mxu0 0
  %254 = vmatpush1.bf16.msra.mxu0 0
  %255 = vmatprep.subr.bf16.mxu0 0
  %256 = vmatpush1.bf16.msra.mxu0 0
  %257 = vmatprep.subr.bf16.mxu0 0
  %258 = vmatpush1.bf16.msra.mxu0 %v241
  %259 = vmatprep.subr.bf16.mxu0 0
  %260 = vmatpush2.bf16.msra.mxu0 0
  %261 = vmatprep.subr.bf16.mxu0 0
  %262 = vmatpush2.bf16.msra.mxu0 0
  %263 = vmatprep.subr.bf16.mxu0 0
  %264 = vmatpush2.bf16.msra.mxu0 0
  %265 = vmatprep.subr.bf16.mxu0 0
  %266 = vmatpush2.bf16.msra.mxu0 0
  %267 = vmatprep.subr.bf16.mxu0 0
  %268 = vmatpush2.bf16.msra.mxu0 0
  %269 = vmatprep.subr.bf16.mxu0 0
  %270 = vmatpush2.bf16.msra.mxu0 0
  %271 = vmatprep.subr.bf16.mxu0 0
  %272 = vmatpush2.bf16.msra.mxu0 0
  %273 = vmatprep.subr.bf16.mxu0 0
  %274 = vmatpush2.bf16.msra.mxu0 0
  %275 = vmatprep.mubr.bf16.mxu0 0
  %276 = vmatmul.mubr.bf16.gmra.mxu0 %v194
  %v277 = vpop.f32.mrf.mxu0
  %v278 = vadd.f32 0.0, %v277
  %v279 = vpop.f32.mrf.mxu0
  %v280 = vpop.f32.mrf.mxu0
  %v281 = vpop.f32.mrf.mxu0
  %282 = vdwg.mxu0
  %vm283 = vcmp.gt.f32.partialorder %v235, 0.0
  %vm284 = vcmp.gt.f32.partialorder %v278, 0.0
  %v285 = vmul.f32 %v235, 0.2
  %v286 = vmul.f32 %v278, 0.2
  %v287 = vsel %vm283, %v235, %v285
  %v288 = vsel %vm284, %v278, %v286
  %s289 = smul.u32 4, 8
  %s290 = smul.u32 %s289, 1
  %s291 = sshll.u32 %s290, 4
  %292 = dma.done [#allocation4], %s291
  %v293 = vpack.c.bf16 %v287, %v287
  %v294 = vpack.c.bf16 %v288, %v288
  %v295 = vld [vmem:[#allocation2] sm:$0xf]
  %v296 = vld [vmem:[#allocation2 + $0x4] sm:$0xf]
  %v297 = vld [vmem:[#allocation2 + $0x8] sm:$0xf]
  %v298 = vld [vmem:[#allocation2 + $0xc] sm:$0xf]
  %v299 = vld [vmem:[#allocation2 + $0x10] sm:$0xf]
  %v300 = vld [vmem:[#allocation2 + $0x14] sm:$0xf]
  %v301 = vld [vmem:[#allocation2 + $0x18] sm:$0xf]
  %v302 = vld [vmem:[#allocation2 + $0x1c] sm:$0xf]
  %v305 = vunpack.c.l.b16 %v293
  %v306 = vunpack.c.l.b16 %v294
  %v307 = vpack.c.b16 %v306, %v305
  %v316 = vunpack.c.l.b16 %v295
  %v317 = vunpack.c.l.b16 %v296
  %v318 = vunpack.c.l.b16 %v297
  %v319 = vunpack.c.l.b16 %v298
  %v320 = vunpack.c.l.b16 %v299
  %v321 = vunpack.c.l.b16 %v300
  %v322 = vunpack.c.l.b16 %v301
  %v323 = vunpack.c.l.b16 %v302
  %v324 = vpack.c.b16 %v317, %v316
  %v325 = vpack.c.b16 %v319, %v318
  %v326 = vpack.c.b16 %v321, %v320
  %v327 = vpack.c.b16 %v323, %v322
  %vm332 = vcmask 523264
  %v334 = vsel %vm332, %v307, 0
  %336 = vmatprep.subr.bf16.mxu0 0
  %337 = vmatpush1.bf16.msra.mxu0 0
  %338 = vmatprep.subr.bf16.mxu0 0
  %339 = vmatpush1.bf16.msra.mxu0 0
  %340 = vmatprep.subr.bf16.mxu0 0
  %341 = vmatpush1.bf16.msra.mxu0 0
  %342 = vmatprep.subr.bf16.mxu0 0
  %343 = vmatpush1.bf16.msra.mxu0 0
  %344 = vmatprep.subr.bf16.mxu0 0
  %345 = vmatpush1.bf16.msra.mxu0 %v327
  %346 = vmatprep.subr.bf16.mxu0 0
  %347 = vmatpush1.bf16.msra.mxu0 %v326
  %348 = vmatprep.subr.bf16.mxu0 0
  %349 = vmatpush1.bf16.msra.mxu0 %v325
  %350 = vmatprep.subr.bf16.mxu0 0
  %351 = vmatpush1.bf16.msra.mxu0 %v324
  %352 = vmatprep.subr.bf16.mxu0 0
  %353 = vmatpush2.bf16.msra.mxu0 0
  %354 = vmatprep.subr.bf16.mxu0 0
  %355 = vmatpush2.bf16.msra.mxu0 0
  %356 = vmatprep.subr.bf16.mxu0 0
  %357 = vmatpush2.bf16.msra.mxu0 0
  %358 = vmatprep.subr.bf16.mxu0 0
  %359 = vmatpush2.bf16.msra.mxu0 0
  %360 = vmatprep.subr.bf16.mxu0 0
  %361 = vmatpush2.bf16.msra.mxu0 0
  %362 = vmatprep.subr.bf16.mxu0 0
  %363 = vmatpush2.bf16.msra.mxu0 0
  %364 = vmatprep.subr.bf16.mxu0 0
  %365 = vmatpush2.bf16.msra.mxu0 0
  %366 = vmatprep.subr.bf16.mxu0 0
  %367 = vmatpush2.bf16.msra.mxu0 0
  %368 = vmatprep.mubr.bf16.mxu0 0
  %369 = vmatmul.mubr.bf16.gmra.mxu0 %v334
  %v370 = vpop.f32.mrf.mxu0
  %v371 = vadd.f32 0.0, %v370
  %v372 = vpop.f32.mrf.mxu0
  %v373 = vpop.f32.mrf.mxu0
  %v374 = vadd.f32 0.0, %v373
  %v375 = vpop.f32.mrf.mxu0
  %376 = vdwg.mxu0
  %v377 = vpack.c.bf16 %v371, %v371
  %v378 = vpack.c.bf16 %v374, %v374
  %v380 = vsel %vm196, %v377, 0
  %382 = vmatprep.subr.bf16.mxu0 0
  %383 = vmatpush1.bf16.msra.mxu0 0
  %384 = vmatprep.subr.bf16.mxu0 0
  %385 = vmatpush1.bf16.msra.mxu0 0
  %386 = vmatprep.subr.bf16.mxu0 0
  %387 = vmatpush1.bf16.msra.mxu0 0
  %388 = vmatprep.subr.bf16.mxu0 0
  %389 = vmatpush1.bf16.msra.mxu0 0
  %390 = vmatprep.subr.bf16.mxu0 0
  %391 = vmatpush1.bf16.msra.mxu0 0
  %392 = vmatprep.subr.bf16.mxu0 0
  %393 = vmatpush1.bf16.msra.mxu0 0
  %394 = vmatprep.subr.bf16.mxu0 0
  %395 = vmatpush1.bf16.msra.mxu0 0
  %396 = vmatprep.subr.bf16.mxu0 0
  %397 = vmatpush1.bf16.msra.mxu0 %v380
  %398 = vmatprep.subr.bf16.mxu0 0
  %399 = vmatpush2.bf16.msra.mxu0 0
  %400 = vmatprep.subr.bf16.mxu0 0
  %401 = vmatpush2.bf16.msra.mxu0 0
  %402 = vmatprep.subr.bf16.mxu0 0
  %403 = vmatpush2.bf16.msra.mxu0 0
  %404 = vmatprep.subr.bf16.mxu0 0
  %405 = vmatpush2.bf16.msra.mxu0 0
  %406 = vmatprep.subr.bf16.mxu0 0
  %407 = vmatpush2.bf16.msra.mxu0 0
  %408 = vmatprep.subr.bf16.mxu0 0
  %409 = vmatpush2.bf16.msra.mxu0 0
  %410 = vmatprep.subr.bf16.mxu0 0
  %411 = vmatpush2.bf16.msra.mxu0 0
  %412 = vmatprep.subr.bf16.mxu0 0
  %413 = vmatpush2.bf16.msra.mxu0 0
  %414 = vmatprep.mubr.bf16.mxu0 0
  %415 = vmatmul.mubr.bf16.gmra.mxu0 %v194
  %v416 = vpop.f32.mrf.mxu0
  %v417 = vadd.f32 0.0, %v416
  %v418 = vpop.f32.mrf.mxu0
  %v419 = vpop.f32.mrf.mxu0
  %v420 = vpop.f32.mrf.mxu0
  %421 = vdwg.mxu0
  %v423 = vsel %vm196, %v378, 0
  %425 = vmatprep.subr.bf16.mxu0 0
  %426 = vmatpush1.bf16.msra.mxu0 0
  %427 = vmatprep.subr.bf16.mxu0 0
  %428 = vmatpush1.bf16.msra.mxu0 0
  %429 = vmatprep.subr.bf16.mxu0 0
  %430 = vmatpush1.bf16.msra.mxu0 0
  %431 = vmatprep.subr.bf16.mxu0 0
  %432 = vmatpush1.bf16.msra.mxu0 0
  %433 = vmatprep.subr.bf16.mxu0 0
  %434 = vmatpush1.bf16.msra.mxu0 0
  %435 = vmatprep.subr.bf16.mxu0 0
  %436 = vmatpush1.bf16.msra.mxu0 0
  %437 = vmatprep.subr.bf16.mxu0 0
  %438 = vmatpush1.bf16.msra.mxu0 0
  %439 = vmatprep.subr.bf16.mxu0 0
  %440 = vmatpush1.bf16.msra.mxu0 %v423
  %441 = vmatprep.subr.bf16.mxu0 0
  %442 = vmatpush2.bf16.msra.mxu0 0
  %443 = vmatprep.subr.bf16.mxu0 0
  %444 = vmatpush2.bf16.msra.mxu0 0
  %445 = vmatprep.subr.bf16.mxu0 0
  %446 = vmatpush2.bf16.msra.mxu0 0
  %447 = vmatprep.subr.bf16.mxu0 0
  %448 = vmatpush2.bf16.msra.mxu0 0
  %449 = vmatprep.subr.bf16.mxu0 0
  %450 = vmatpush2.bf16.msra.mxu0 0
  %451 = vmatprep.subr.bf16.mxu0 0
  %452 = vmatpush2.bf16.msra.mxu0 0
  %453 = vmatprep.subr.bf16.mxu0 0
  %454 = vmatpush2.bf16.msra.mxu0 0
  %455 = vmatprep.subr.bf16.mxu0 0
  %456 = vmatpush2.bf16.msra.mxu0 0
  %457 = vmatprep.mubr.bf16.mxu0 0
  %458 = vmatmul.mubr.bf16.gmra.mxu0 %v194
  %v459 = vpop.f32.mrf.mxu0
  %v460 = vadd.f32 0.0, %v459
  %v461 = vpop.f32.mrf.mxu0
  %v462 = vpop.f32.mrf.mxu0
  %v463 = vpop.f32.mrf.mxu0
  %464 = vdwg.mxu0
  %v465 = vpack.c.bf16 %v417, %v417
  %v466 = vpack.c.bf16 %v460, %v460
  %v468 = vsel %vm145, %v121, 0
  %v471 = vsel %vm145, %v465, 0
  %473 = vmatprep.subr.bf16.mxu0 0
  %474 = vmatpush1.bf16.xpose.msra.mxu0 0
  %475 = vmatprep.subr.bf16.mxu0 0
  %476 = vmatpush1.bf16.xpose.msra.mxu0 0
  %477 = vmatprep.subr.bf16.mxu0 0
  %478 = vmatpush1.bf16.xpose.msra.mxu0 0
  %479 = vmatprep.subr.bf16.mxu0 0
  %480 = vmatpush1.bf16.xpose.msra.mxu0 0
  %481 = vmatprep.subr.bf16.mxu0 0
  %482 = vmatpush1.bf16.xpose.msra.mxu0 0
  %483 = vmatprep.subr.bf16.mxu0 0
  %484 = vmatpush1.bf16.xpose.msra.mxu0 0
  %485 = vmatprep.subr.bf16.mxu0 0
  %486 = vmatpush1.bf16.xpose.msra.mxu0 0
  %487 = vmatprep.subr.bf16.mxu0 0
  %488 = vmatpush1.bf16.xpose.msra.mxu0 %v471
  %489 = vmatprep.subr.bf16.mxu0 0
  %490 = vmatpush2.bf16.xpose.msra.mxu0 0
  %491 = vmatprep.subr.bf16.mxu0 0
  %492 = vmatpush2.bf16.xpose.msra.mxu0 0
  %493 = vmatprep.subr.bf16.mxu0 0
  %494 = vmatpush2.bf16.xpose.msra.mxu0 0
  %495 = vmatprep.subr.bf16.mxu0 0
  %496 = vmatpush2.bf16.xpose.msra.mxu0 0
  %497 = vmatprep.subr.bf16.mxu0 0
  %498 = vmatpush2.bf16.xpose.msra.mxu0 0
  %499 = vmatprep.subr.bf16.mxu0 0
  %500 = vmatpush2.bf16.xpose.msra.mxu0 0
  %501 = vmatprep.subr.bf16.mxu0 0
  %502 = vmatpush2.bf16.xpose.msra.mxu0 0
  %503 = vmatprep.subr.bf16.mxu0 0
  %504 = vmatpush2.bf16.xpose.msra.mxu0 0
  %505 = vmatprep.mubr.bf16.mxu0 0
  %506 = vmatmul.mubr.bf16.gmra.mxu0 %v468
  %v507 = vpop.f32.mrf.mxu0
  %v508 = vadd.f32 0.0, %v507
  %v509 = vpop.f32.mrf.mxu0
  %v510 = vpop.f32.mrf.mxu0
  %v511 = vpop.f32.mrf.mxu0
  %512 = vdwg.mxu0
  %v514 = vsel %vm145, %v122, 0
  %v517 = vsel %vm145, %v466, 0
  %519 = vmatprep.subr.bf16.mxu0 0
  %520 = vmatpush1.bf16.xpose.msra.mxu0 0
  %521 = vmatprep.subr.bf16.mxu0 0
  %522 = vmatpush1.bf16.xpose.msra.mxu0 0
  %523 = vmatprep.subr.bf16.mxu0 0
  %524 = vmatpush1.bf16.xpose.msra.mxu0 0
  %525 = vmatprep.subr.bf16.mxu0 0
  %526 = vmatpush1.bf16.xpose.msra.mxu0 0
  %527 = vmatprep.subr.bf16.mxu0 0
  %528 = vmatpush1.bf16.xpose.msra.mxu0 0
  %529 = vmatprep.subr.bf16.mxu0 0
  %530 = vmatpush1.bf16.xpose.msra.mxu0 0
  %531 = vmatprep.subr.bf16.mxu0 0
  %532 = vmatpush1.bf16.xpose.msra.mxu0 0
  %533 = vmatprep.subr.bf16.mxu0 0
  %534 = vmatpush1.bf16.xpose.msra.mxu0 %v517
  %535 = vmatprep.subr.bf16.mxu0 0
  %536 = vmatpush2.bf16.xpose.msra.mxu0 0
  %537 = vmatprep.subr.bf16.mxu0 0
  %538 = vmatpush2.bf16.xpose.msra.mxu0 0
  %539 = vmatprep.subr.bf16.mxu0 0
  %540 = vmatpush2.bf16.xpose.msra.mxu0 0
  %541 = vmatprep.subr.bf16.mxu0 0
  %542 = vmatpush2.bf16.xpose.msra.mxu0 0
  %543 = vmatprep.subr.bf16.mxu0 0
  %544 = vmatpush2.bf16.xpose.msra.mxu0 0
  %545 = vmatprep.subr.bf16.mxu0 0
  %546 = vmatpush2.bf16.xpose.msra.mxu0 0
  %547 = vmatprep.subr.bf16.mxu0 0
  %548 = vmatpush2.bf16.xpose.msra.mxu0 0
  %549 = vmatprep.subr.bf16.mxu0 0
  %550 = vmatpush2.bf16.xpose.msra.mxu0 0
  %551 = vmatprep.mubr.bf16.mxu0 0
  %552 = vmatmul.mubr.bf16.gmra.mxu0 %v514
  %v553 = vpop.f32.mrf.mxu0
  %v554 = vadd.f32 0.0, %v553
  %v555 = vpop.f32.mrf.mxu0
  %v556 = vpop.f32.mrf.mxu0
  %v557 = vpop.f32.mrf.mxu0
  %558 = vdwg.mxu0
  %v559 = vsel %vm192, %v508, -inf
  %v560 = vsel %vm192, %v554, -inf
  %v561 = vmax.f32 %v559, %v560
  %v562 = vsub.f32 %v508, %v561
  %v563 = vsub.f32 %v554, %v561
  %v564 = vmul.f32 %v562, 1.442695
  %v565 = vpow.pop %v564
  %v566 = vmul.f32 %v563, 1.442695
  %v567 = vpow.pop %v566
  %v568 = vsel %vm192, %v565, 0.0
  %v569 = vsel %vm192, %v567, 0.0
  %v570 = vadd.f32 %v568, %v569
  %v571 = vrcp.pop %v570
  %v572 = vmul.f32 %v565, %v571
  %v573 = vmul.f32 %v567, %v571
  %v574 = vpack.c.bf16 %v572, %v572
  %v575 = vpack.c.bf16 %v573, %v573
  %v576 = vunpack.c.l.bf16 %v121
  %v577 = vunpack.c.l.bf16 %v122
  %v579 = vsel %vm192, %v574, 0
  %v581 = vsel %vm196, %v121, 0
  %583 = vmatprep.subr.bf16.mxu0 0
  %584 = vmatpush1.bf16.msra.mxu0 0
  %585 = vmatprep.subr.bf16.mxu0 0
  %586 = vmatpush1.bf16.msra.mxu0 0
  %587 = vmatprep.subr.bf16.mxu0 0
  %588 = vmatpush1.bf16.msra.mxu0 0
  %589 = vmatprep.subr.bf16.mxu0 0
  %590 = vmatpush1.bf16.msra.mxu0 0
  %591 = vmatprep.subr.bf16.mxu0 0
  %592 = vmatpush1.bf16.msra.mxu0 0
  %593 = vmatprep.subr.bf16.mxu0 0
  %594 = vmatpush1.bf16.msra.mxu0 0
  %595 = vmatprep.subr.bf16.mxu0 0
  %596 = vmatpush1.bf16.msra.mxu0 0
  %597 = vmatprep.subr.bf16.mxu0 0
  %598 = vmatpush1.bf16.msra.mxu0 %v581
  %599 = vmatprep.subr.bf16.mxu0 0
  %600 = vmatpush2.bf16.msra.mxu0 0
  %601 = vmatprep.subr.bf16.mxu0 0
  %602 = vmatpush2.bf16.msra.mxu0 0
  %603 = vmatprep.subr.bf16.mxu0 0
  %604 = vmatpush2.bf16.msra.mxu0 0
  %605 = vmatprep.subr.bf16.mxu0 0
  %606 = vmatpush2.bf16.msra.mxu0 0
  %607 = vmatprep.subr.bf16.mxu0 0
  %608 = vmatpush2.bf16.msra.mxu0 0
  %609 = vmatprep.subr.bf16.mxu0 0
  %610 = vmatpush2.bf16.msra.mxu0 0
  %611 = vmatprep.subr.bf16.mxu0 0
  %612 = vmatpush2.bf16.msra.mxu0 0
  %613 = vmatprep.subr.bf16.mxu0 0
  %614 = vmatpush2.bf16.msra.mxu0 0
  %615 = vmatprep.mubr.bf16.mxu0 0
  %616 = vmatmul.mubr.bf16.gmra.mxu0 %v579
  %v617 = vpop.f32.mrf.mxu0
  %v618 = vadd.f32 %v576, %v617
  %v619 = vpop.f32.mrf.mxu0
  %v620 = vpop.f32.mrf.mxu0
  %v621 = vpop.f32.mrf.mxu0
  %622 = vdwg.mxu0
  %v624 = vsel %vm192, %v575, 0
  %v626 = vsel %vm196, %v122, 0
  %628 = vmatprep.subr.bf16.mxu0 0
  %629 = vmatpush1.bf16.msra.mxu0 0
  %630 = vmatprep.subr.bf16.mxu0 0
  %631 = vmatpush1.bf16.msra.mxu0 0
  %632 = vmatprep.subr.bf16.mxu0 0
  %633 = vmatpush1.bf16.msra.mxu0 0
  %634 = vmatprep.subr.bf16.mxu0 0
  %635 = vmatpush1.bf16.msra.mxu0 0
  %636 = vmatprep.subr.bf16.mxu0 0
  %637 = vmatpush1.bf16.msra.mxu0 0
  %638 = vmatprep.subr.bf16.mxu0 0
  %639 = vmatpush1.bf16.msra.mxu0 0
  %640 = vmatprep.subr.bf16.mxu0 0
  %641 = vmatpush1.bf16.msra.mxu0 0
  %642 = vmatprep.subr.bf16.mxu0 0
  %643 = vmatpush1.bf16.msra.mxu0 %v626
  %644 = vmatprep.subr.bf16.mxu0 0
  %645 = vmatpush2.bf16.msra.mxu0 0
  %646 = vmatprep.subr.bf16.mxu0 0
  %647 = vmatpush2.bf16.msra.mxu0 0
  %648 = vmatprep.subr.bf16.mxu0 0
  %649 = vmatpush2.bf16.msra.mxu0 0
  %650 = vmatprep.subr.bf16.mxu0 0
  %651 = vmatpush2.bf16.msra.mxu0 0
  %652 = vmatprep.subr.bf16.mxu0 0
  %653 = vmatpush2.bf16.msra.mxu0 0
  %654 = vmatprep.subr.bf16.mxu0 0
  %655 = vmatpush2.bf16.msra.mxu0 0
  %656 = vmatprep.subr.bf16.mxu0 0
  %657 = vmatpush2.bf16.msra.mxu0 0
  %658 = vmatprep.subr.bf16.mxu0 0
  %659 = vmatpush2.bf16.msra.mxu0 0
  %660 = vmatprep.mubr.bf16.mxu0 0
  %661 = vmatmul.mubr.bf16.gmra.mxu0 %v624
  %v662 = vpop.f32.mrf.mxu0
  %v663 = vadd.f32 %v577, %v662
  %v664 = vpop.f32.mrf.mxu0
  %v665 = vpop.f32.mrf.mxu0
  %v666 = vpop.f32.mrf.mxu0
  %667 = vdwg.mxu0
  %v668 = vsel %vm145, %v618, 0.0
  %669 = vadd.xlane.f32.xlu0 %v668
  %v670 = vpop.xlane.xlu0 %669
  %v671 = vsel %vm145, %v663, 0.0
  %672 = vadd.xlane.f32.xlu0 %v671
  %v673 = vpop.xlane.xlu0 %672
  %v674 = vrcp.pop 32.0
  %v675 = vmul.f32 %v670, %v674
  %v676 = vmul.f32 %v673, %v674
  %v677 = vsub.f32 %v618, %v675
  %v678 = vsub.f32 %v663, %v676
  %v679 = vmul.f32 %v677, %v677
  %v680 = vmul.f32 %v678, %v678
  %v681 = vsel %vm145, %v679, 0.0
  %682 = vadd.xlane.f32.xlu0 %v681
  %v683 = vpop.xlane.xlu0 %682
  %v684 = vsel %vm145, %v680, 0.0
  %685 = vadd.xlane.f32.xlu0 %v684
  %v686 = vpop.xlane.xlu0 %685
  %v687 = vmul.f32 %v683, %v674
  %v688 = vmul.f32 %v686, %v674
  %v689 = vadd.f32 %v687, 1e-05
  %v690 = vadd.f32 %v688, 1e-05
  %v691 = vrsqrt.pop %v689
  %v692 = vrsqrt.pop %v690
  %v693 = vmul.f32 %v677, %v691
  %v694 = vmul.f32 %v678, %v692
  %v695 = vld [vmem:[%s4] sm:$0x1]
  %v697 = vlaneseq
  %v698 = vshrl.u32 %v697, 7
  %v699 = vsub.s32 0, %v698
  %v700 = vrot.slane %v695, %v699
  %v702 = vmul.f32 %v693, %v700
  %v703 = vmul.f32 %v694, %v700
  %v704 = vld [vmem:[%s5] sm:$0x1]
  %v706 = vlaneseq
  %v707 = vshrl.u32 %v706, 7
  %v708 = vsub.s32 0, %v707
  %v709 = vrot.slane %v704, %v708
  %v711 = vadd.f32 %v702, %v709
  %v712 = vadd.f32 %v703, %v709
  %s713 = smul.u32 4, 4
  %s714 = smul.u32 %s713, 1
  %s715 = sshll.u32 %s714, 4
  %716 = dma.done %s75, %s715
  %v717 = vpack.c.bf16 %v711, %v711
  %v718 = vpack.c.bf16 %v712, %v712
  %v719 = vld [vmem:[#allocation3] sm:$0xf]
  %v720 = vld [vmem:[#allocation3 + $0x4] sm:$0xf]
  %v721 = vld [vmem:[#allocation3 + $0x8] sm:$0xf]
  %v722 = vld [vmem:[#allocation3 + $0xc] sm:$0xf]
  %v725 = vunpack.c.l.b16 %v717
  %v726 = vunpack.c.l.b16 %v718
  %v727 = vpack.c.b16 %v726, %v725
  %v732 = vunpack.c.l.b16 %v719
  %v733 = vunpack.c.l.b16 %v720
  %v734 = vunpack.c.l.b16 %v721
  %v735 = vunpack.c.l.b16 %v722
  %v736 = vpack.c.b16 %v733, %v732
  %v737 = vpack.c.b16 %v735, %v734
  %v741 = vsel %vm145, %v727, 0
  %743 = vmatprep.subr.bf16.mxu0 0
  %744 = vmatpush1.bf16.msra.mxu0 0
  %745 = vmatprep.subr.bf16.mxu0 0
  %746 = vmatpush1.bf16.msra.mxu0 0
  %747 = vmatprep.subr.bf16.mxu0 0
  %748 = vmatpush1.bf16.msra.mxu0 0
  %749 = vmatprep.subr.bf16.mxu0 0
  %750 = vmatpush1.bf16.msra.mxu0 0
  %751 = vmatprep.subr.bf16.mxu0 0
  %752 = vmatpush1.bf16.msra.mxu0 0
  %753 = vmatprep.subr.bf16.mxu0 0
  %754 = vmatpush1.bf16.msra.mxu0 0
  %755 = vmatprep.subr.bf16.mxu0 0
  %756 = vmatpush1.bf16.msra.mxu0 %v737
  %757 = vmatprep.subr.bf16.mxu0 0
  %758 = vmatpush1.bf16.msra.mxu0 %v736
  %759 = vmatprep.subr.bf16.mxu0 0
  %760 = vmatpush2.bf16.msra.mxu0 0
  %761 = vmatprep.subr.bf16.mxu0 0
  %762 = vmatpush2.bf16.msra.mxu0 0
  %763 = vmatprep.subr.bf16.mxu0 0
  %764 = vmatpush2.bf16.msra.mxu0 0
  %765 = vmatprep.subr.bf16.mxu0 0
  %766 = vmatpush2.bf16.msra.mxu0 0
  %767 = vmatprep.subr.bf16.mxu0 0
  %768 = vmatpush2.bf16.msra.mxu0 0
  %769 = vmatprep.subr.bf16.mxu0 0
  %770 = vmatpush2.bf16.msra.mxu0 0
  %771 = vmatprep.subr.bf16.mxu0 0
  %772 = vmatpush2.bf16.msra.mxu0 0
  %773 = vmatprep.subr.bf16.mxu0 0
  %774 = vmatpush2.bf16.msra.mxu0 0
  %775 = vmatprep.mubr.bf16.mxu0 0
  %776 = vmatmul.mubr.bf16.gmra.mxu0 %v741
  %v777 = vpop.f32.mrf.mxu0
  %v778 = vadd.f32 0.0, %v777
  %v779 = vpop.f32.mrf.mxu0
  %v780 = vpop.f32.mrf.mxu0
  %v781 = vadd.f32 0.0, %v780
  %v782 = vpop.f32.mrf.mxu0
  %783 = vdwg.mxu0
  %v784 = vld [vmem:[%s7] sm:$0x1]
  %v786 = vlaneseq
  %v787 = vshrl.u32 %v786, 7
  %v788 = vsub.s32 0, %v787
  %v789 = vrot.slane %v784, %v788
  %v791 = vadd.f32 %v778, %v789
  %v792 = vadd.f32 %v781, %v789
  %vm793 = vcmask 31744
  %794 = vst.msk [vmem:[%s8] sm:$0xff] %vm793, %v791
  %795 = vst.msk [vmem:[%s8 + $0x8] sm:$0xff] %vm793, %v792
  // Predicated region
  $region94: #{tpu_custom_call.1} parent=0 // pred_check
    _
  $region95: #{tpu_custom_call.1} parent=0 // pred_check_branch
    %797 = sbr.rel (0) target = $region97
  $region96: #{tpu_custom_call.1} parent=0 // pred_region
    _
  $region97: #{tpu_custom_call.1} parent=0 // pred_fallthru
    _
  // Predicated region
  $region98: #{tpu_custom_call.1} parent=0 // pred_check
    _
  $region99: #{tpu_custom_call.1} parent=0 // pred_check_branch
    %799 = sbr.rel (0) target = $region101
  $region100: #{tpu_custom_call.1} parent=0 // pred_region
    _
  $region101: #{tpu_custom_call.1} parent=0 // pred_fallthru
    _
  %800 = vsyncmov [#allocation4]
  %s801 = vpop.sfrf %800
  %p802 = scmp.eq.s32.totalorder %s801, 0
  %p803 = pneg %p802
  %805 = shalt.err (%p803)
  %s806 = scalar_lea.sflag [#allocation4], 1
  %807 = vsyncmov %s806
  %s808 = vpop.sfrf %807
  %p809 = scmp.eq.s32.totalorder %s808, 0
  %p810 = pneg %p809
  %812 = shalt.err (%p810)

</llo_original>
